<compile_context>
chip_gen: v6e
topology: v6e:2x2x1
jax: 0.10.0
libtpu: 0.0.40
codegen_flags: <defaults>
</compile_context>

<pallas_src>
import functools

import jax
import jax.numpy as jnp
from jax.experimental import pallas as pl
from jax.experimental.pallas import tpu as pltpu


# ----------------------------------------------------------------------------
# Kernel 1: fused Hyena / Mega branch
#   inputs_embeds (B,L,Din) -> w_in -> gated causal Toeplitz recurrence
#   -> folded (w_out @ linear_layer) projection -> reduced^T of shape (L, B)
# ----------------------------------------------------------------------------
def _mega_kernel(x_ref, w_in_ref, b_in_ref, toe_ref, w_bd_ref, b_proj_ref,
                 out_ref, y_scr, g_scr, *, order, d_model):
    D = d_model
    B = x_ref.shape[0]

    # Per-sample input projection, written as column slabs of an (L, B*D) layout
    # so the recurrence below runs as ONE (L,L)@(L,B*D) MXU matmul per order.
    for b in range(B):
        u = jnp.dot(x_ref[b], w_in_ref[...],
                    preferred_element_type=jnp.float32) + b_in_ref[...]
        y_scr[:, b * D:(b + 1) * D] = u[:, :D]
        for o in range(order):
            g_scr[o, :, b * D:(b + 1) * D] = u[:, (o + 1) * D:(o + 2) * D]

    y = y_scr[...]                                                  # (L, B*D)
    for o in range(order):
        conv = jnp.dot(toe_ref[o], y, preferred_element_type=jnp.float32)
        y = g_scr[o] * conv

    # Folded output projection + linear_layer, block-diagonal over the batch
    # slabs: out[:, b] = y[:, b*D:(b+1)*D] @ w_proj   -> reduced^T (L, B).
    r = jnp.dot(y, w_bd_ref[...], preferred_element_type=jnp.float32)
    out_ref[...] = (r + b_proj_ref[...]).astype(out_ref.dtype)


def mega_branch(inputs_embeds, w_in, b_in, toeplitz, w_bd, b_proj,
                *, order, d_model):
    B, L, Din = inputs_embeds.shape
    OD = (order + 1) * d_model
    BD = w_bd.shape[0]
    kernel = functools.partial(_mega_kernel, order=order, d_model=d_model)
    return pl.pallas_call(
        kernel,
        out_shape=jax.ShapeDtypeStruct((L, B), jnp.float32),
        grid=(1,),
        in_specs=[
            pl.BlockSpec((B, L, Din), lambda i: (0, 0, 0)),
            pl.BlockSpec((Din, OD), lambda i: (0, 0)),
            pl.BlockSpec((1, OD), lambda i: (0, 0)),
            pl.BlockSpec((order, L, L), lambda i: (0, 0, 0)),
            pl.BlockSpec((BD, B), lambda i: (0, 0)),
            pl.BlockSpec((1, 1), lambda i: (0, 0)),
        ],
        out_specs=pl.BlockSpec((L, B), lambda i: (0, 0)),
        scratch_shapes=[
            pltpu.VMEM((L, BD), jnp.float32),
            pltpu.VMEM((order, L, BD), jnp.float32),
        ],
    )(inputs_embeds, w_in, b_in, toeplitz, w_bd, b_proj)


# ----------------------------------------------------------------------------
# Kernel 2: fused 2-layer GraphSAGE (mean aggregation); a_norm DMA'd once.
# ----------------------------------------------------------------------------
def _sage2_kernel(a_ref, x_ref, ws1_ref, wn1_ref, b1_ref,
                  ws2_ref, wn2_ref, b2_ref, o_ref):
    a = a_ref[...]
    x = x_ref[...]
    # layer 1: aggregate first (F_in < F_out keeps the N^2 contraction narrow)
    agg1 = jnp.dot(a, x, preferred_element_type=jnp.float32)
    h1 = (jnp.dot(x, ws1_ref[...], preferred_element_type=jnp.float32)
          + jnp.dot(agg1, wn1_ref[...], preferred_element_type=jnp.float32)
          + b1_ref[...])
    h1 = jnp.maximum(h1, 0.0)
    # layer 2
    agg2 = jnp.dot(a, h1, preferred_element_type=jnp.float32)
    h2 = (jnp.dot(h1, ws2_ref[...], preferred_element_type=jnp.float32)
          + jnp.dot(agg2, wn2_ref[...], preferred_element_type=jnp.float32)
          + b2_ref[...])
    # TODO(synk): ReLU on the last SAGE layer assumed (SAGE_OneHot_MLP source not given).
    h2 = jnp.maximum(h2, 0.0)
    o_ref[...] = h2.astype(o_ref.dtype)


def sage_embeddings(a_norm, x, ws1, wn1, b1, ws2, wn2, b2):
    N, Fin = x.shape
    H = ws1.shape[1]
    return pl.pallas_call(
        _sage2_kernel,
        out_shape=jax.ShapeDtypeStruct((N, H), jnp.float32),
        grid=(1,),
        in_specs=[
            pl.BlockSpec((N, N), lambda i: (0, 0)),
            pl.BlockSpec((N, Fin), lambda i: (0, 0)),
            pl.BlockSpec((Fin, H), lambda i: (0, 0)),
            pl.BlockSpec((Fin, H), lambda i: (0, 0)),
            pl.BlockSpec((1, H), lambda i: (0, 0)),
            pl.BlockSpec((H, H), lambda i: (0, 0)),
            pl.BlockSpec((H, H), lambda i: (0, 0)),
            pl.BlockSpec((1, H), lambda i: (0, 0)),
        ],
        out_specs=pl.BlockSpec((N, H), lambda i: (0, 0)),
    )(a_norm, x, ws1, wn1, b1.reshape(1, H), ws2, wn2, b2.reshape(1, H))


# ----------------------------------------------------------------------------
# Kernel 3: fused fc head over cat(sage_emb[:B], reduced)
#   Linear -> BN(eval) -> ReLU -> Linear -> BN(eval) -> ReLU -> Linear
#   (the cat is replaced by splitting W1 into its two row blocks)
# ----------------------------------------------------------------------------
def _head_kernel(sage_ref, red_ref, w1s_ref, w1r_ref, b1_ref, s1_ref, t1_ref,
                 w2_ref, b2_ref, s2_ref, t2_ref, w3_ref, b3_ref, o_ref):
    h = (jnp.dot(sage_ref[...], w1s_ref[...], preferred_element_type=jnp.float32)
         + jnp.dot(red_ref[...], w1r_ref[...], preferred_element_type=jnp.float32)
         + b1_ref[...])
    h = jnp.maximum(h * s1_ref[...] + t1_ref[...], 0.0)        # BN1 (eval) + ReLU
    h = jnp.dot(h, w2_ref[...], preferred_element_type=jnp.float32) + b2_ref[...]
    h = jnp.maximum(h * s2_ref[...] + t2_ref[...], 0.0)        # BN2 (eval) + ReLU
    o_ref[...] = (jnp.dot(h, w3_ref[...], preferred_element_type=jnp.float32)
                  + b3_ref[...]).astype(o_ref.dtype)


def fc_head(sage_top, reduced, w1s, w1r, b1, s1, t1, w2, b2, s2, t2, w3, b3):
    B, H = sage_top.shape
    L = reduced.shape[1]
    H1 = w1s.shape[1]
    H2 = w2.shape[1]
    return pl.pallas_call(
        _head_kernel,
        out_shape=jax.ShapeDtypeStruct((B, 1), jnp.float32),
        grid=(1,),
        in_specs=[
            pl.BlockSpec((B, H), lambda i: (0, 0)),
            pl.BlockSpec((B, L), lambda i: (0, 0)),
            pl.BlockSpec((H, H1), lambda i: (0, 0)),
            pl.BlockSpec((L, H1), lambda i: (0, 0)),
            pl.BlockSpec((1, H1), lambda i: (0, 0)),
            pl.BlockSpec((1, H1), lambda i: (0, 0)),
            pl.BlockSpec((1, H1), lambda i: (0, 0)),
            pl.BlockSpec((H1, H2), lambda i: (0, 0)),
            pl.BlockSpec((1, H2), lambda i: (0, 0)),
            pl.BlockSpec((1, H2), lambda i: (0, 0)),
            pl.BlockSpec((1, H2), lambda i: (0, 0)),
            pl.BlockSpec((H2, 1), lambda i: (0, 0)),
            pl.BlockSpec((1, 1), lambda i: (0, 0)),
        ],
        out_specs=pl.BlockSpec((B, 1), lambda i: (0, 0)),
    )(sage_top, reduced, w1s, w1r, b1, s1, t1, w2, b2, s2, t2, w3, b3)


# ----------------------------------------------------------------------------
# Parameter construction (deterministic, synthetic)
# ----------------------------------------------------------------------------
def _dense(key, shape):
    fan_in = shape[0]
    return (jax.random.normal(key, shape, jnp.float32) /
            jnp.sqrt(jnp.float32(fan_in))).astype(jnp.float32)


def init_params(key, *, num_features, input_dim, d_model, order,
                in_channels, hidden_channels, hidden1, hidden2):
    ks = jax.random.split(key, 16)
    L, D = num_features, d_model
    mega = {
        "d_model": D,
        "order": order,
        "w_in": _dense(ks[0], (input_dim, (order + 1) * D)),
        "b_in": jnp.zeros(((order + 1) * D,), jnp.float32),
        # implicit long-conv filters (one per order), exponentially decayed
        "filt": (jax.random.normal(ks[1], (order, L), jnp.float32)
                 * jnp.exp(-0.3 * jnp.arange(L, dtype=jnp.float32))[None, :]),
        "w_out": _dense(ks[2], (D, input_dim)),          # back to hidden_size=input_dim
        "b_out": jnp.zeros((input_dim,), jnp.float32),
    }
    sage = {
        "w_self1": _dense(ks[3], (in_channels, hidden_channels)),
        "w_neigh1": _dense(ks[4], (in_channels, hidden_channels)),
        "b1": jnp.zeros((hidden_channels,), jnp.float32),
        "w_self2": _dense(ks[5], (hidden_channels, hidden_channels)),
        "w_neigh2": _dense(ks[6], (hidden_channels, hidden_channels)),
        "b2": jnp.zeros((hidden_channels,), jnp.float32),
    }
    fc_in = num_features + hidden_channels
    fc = {
        "w1": _dense(ks[7], (fc_in, hidden1)),
        "b1": jnp.zeros((hidden1,), jnp.float32),
        "bn1_gamma": jnp.ones((hidden1,), jnp.float32),
        "bn1_beta": jnp.zeros((hidden1,), jnp.float32),
        "bn1_mean": jnp.zeros((hidden1,), jnp.float32),
        "bn1_var": jnp.ones((hidden1,), jnp.float32),
        "w2": _dense(ks[8], (hidden1, hidden2)),
        "b2": jnp.zeros((hidden2,), jnp.float32),
        "bn2_gamma": jnp.ones((hidden2,), jnp.float32),
        "bn2_beta": jnp.zeros((hidden2,), jnp.float32),
        "bn2_mean": jnp.zeros((hidden2,), jnp.float32),
        "bn2_var": jnp.ones((hidden2,), jnp.float32),
        "w3": _dense(ks[9], (hidden2, 1)),
        "b3": jnp.zeros((1,), jnp.float32),
    }
    return {
        "mega": mega,
        "sage": sage,
        "fc": fc,
        "red_w": _dense(ks[10], (input_dim, 1)),          # self.linear_layer
        "red_b": jnp.zeros((1,), jnp.float32),
    }


# ----------------------------------------------------------------------------
# Forward pass (mirrors HyenaGraphSage_1MLP_cat_Reduced_Pretrained.forward)
# ----------------------------------------------------------------------------
def hyena_graphsage_forward(params, x, edge_index, inputs_embeds, batch_size):
    # ---------------- Hyena / Mega branch (one fused kernel) ----------------
    p = params["mega"]
    B, L, Din = inputs_embeds.shape
    D, order = p["d_model"], p["order"]

    # Causal Toeplitz matrices from the implicit per-order filters (glue).
    idx = jnp.arange(L)
    rel = idx[:, None] - idx[None, :]
    toe = jnp.where(rel >= 0, p["filt"][:, jnp.clip(rel, 0, L - 1)],
                    0.0).astype(jnp.float32)                       # (order, L, L)

    # Fold the output projection (D -> input_dim) with self.linear_layer
    # (input_dim -> 1); both are affine so the composition is exact.  Expand to
    # a block-diagonal so the kernel does one (L, B*D)@(B*D, B) matmul.
    w_proj = p["w_out"] @ params["red_w"]                          # (D, 1)
    b_proj = (p["b_out"] @ params["red_w"] + params["red_b"]).reshape(1, 1)
    w_bd = jnp.kron(jnp.eye(B, dtype=jnp.float32), w_proj)         # (B*D, B)

    red_t = mega_branch(inputs_embeds, p["w_in"], p["b_in"].reshape(1, -1),
                        toe, w_bd, b_proj, order=order, d_model=D)  # (L, B)
    reduced = red_t.T                                              # (B, L) == reduced_tensor

    # ---------------- GraphSAGE branch (one fused kernel) ----------------
    q = params["sage"]
    n_nodes = x.shape[0]
    src, dst = edge_index[0], edge_index[1]
    # Dense row-normalized adjacency for mean aggregation (glue).
    # TODO(synk): duplicate edges are counted; PyG-style dedup not reproduced.
    adj = jnp.zeros((n_nodes, n_nodes), jnp.float32).at[dst, src].add(1.0)
    deg = jnp.maximum(adj.sum(axis=1, keepdims=True), 1.0)
    a_norm = adj / deg

    sage_emb = sage_embeddings(a_norm, x, q["w_self1"], q["w_neigh1"], q["b1"],
                               q["w_self2"], q["w_neigh2"], q["b2"])  # (N, H)
    # sageLogits (the SAGE MLP head) is unused by this forward -> skipped.

    # ---------------- fc head over cat(sage_emb[:B], reduced) ----------------
    f = params["fc"]
    H = sage_emb.shape[1]
    eps = 1e-5
    s1 = f["bn1_gamma"] / jnp.sqrt(f["bn1_var"] + eps)
    t1 = f["bn1_beta"] - f["bn1_mean"] * s1
    s2 = f["bn2_gamma"] / jnp.sqrt(f["bn2_var"] + eps)
    t2 = f["bn2_beta"] - f["bn2_mean"] * s2
    # cat((sage_emb[:B], reduced), dim=1) @ W1 == sage@W1[:H] + reduced@W1[H:]
    logits = fc_head(
        sage_emb[:batch_size], reduced,
        f["w1"][:H], f["w1"][H:],
        f["b1"].reshape(1, -1), s1.reshape(1, -1), t1.reshape(1, -1),
        f["w2"], f["b2"].reshape(1, -1), s2.reshape(1, -1), t2.reshape(1, -1),
        f["w3"], f["b3"].reshape(1, 1),
    )
    return logits.reshape(-1)


# ----------------------------------------------------------------------------
if __name__ == "__main__":
    key = jax.random.PRNGKey(0)
    k_param, k_x, k_emb, k_edge = jax.random.split(key, 4)

    # small, forward-consistent shapes
    batch_size = 4
    num_features = 16        # sequence length L (== reduced_tensor width)
    input_dim = 3
    d_model = 8              # internal Hyena width (TODO(synk): simplified encoder)
    order = 2
    n_nodes = 12
    in_channels = 6
    hidden_channels = 16     # scaled-down 256
    hidden1 = 128            # scaled-down 1000 (kept lane-dense)
    hidden2 = 64             # scaled-down 500

    params = init_params(
        k_param,
        num_features=num_features, input_dim=input_dim,
        d_model=d_model, order=order,
        in_channels=in_channels, hidden_channels=hidden_channels,
        hidden1=hidden1, hidden2=hidden2,
    )

    x = jax.random.normal(k_x, (n_nodes, in_channels), jnp.float32)
    inputs_embeds = jax.random.normal(
        k_emb, (batch_size, num_features, input_dim), jnp.float32)
    edge_index = jax.random.randint(k_edge, (2, 32), 0, n_nodes, dtype=jnp.int32)

    logits = hyena_graphsage_forward(params, x, edge_index, inputs_embeds, batch_size)
    jax.block_until_ready(logits)
    assert logits.shape == (batch_size,)
    print("KERNEL_OK")
</pallas_src>

<mosaic_0001>
module attributes {stable_mosaic.version = 11 : i64} {
  func.func @_mega_kernel(%arg0: i32, %arg1: memref<4x16x3xf32, #tpu.memory_space<vmem>>, %arg2: memref<3x24xf32, #tpu.memory_space<vmem>>, %arg3: memref<1x24xf32, #tpu.memory_space<vmem>>, %arg4: memref<2x16x16xf32, #tpu.memory_space<vmem>>, %arg5: memref<32x4xf32, #tpu.memory_space<vmem>>, %arg6: memref<1x1xf32, #tpu.memory_space<vmem>>, %arg7: memref<16x4xf32, #tpu.memory_space<vmem>>, %arg8: memref<16x32xf32, #tpu.memory_space<vmem>>, %arg9: memref<2x16x32xf32, #tpu.memory_space<vmem>>) attributes {dimension_semantics = [#tpu.dimension_semantics<arbitrary>], iteration_bounds = array<i64: 1>, scalar_prefetch = 0 : i64, scratch_operands = 2 : i64, tpu.core_type = #tpu.core_type<tc>, window_params = [{pipeline_mode = #tpu.pipeline_mode<synchronous>, transform_indices = @transform_0, window_bounds = array<i64: 4, 16, 3>}, {pipeline_mode = #tpu.pipeline_mode<synchronous>, transform_indices = @transform_1, window_bounds = array<i64: 3, 24>}, {pipeline_mode = #tpu.pipeline_mode<synchronous>, transform_indices = @transform_2, window_bounds = array<i64: 1, 24>}, {pipeline_mode = #tpu.pipeline_mode<synchronous>, transform_indices = @transform_3, window_bounds = array<i64: 2, 16, 16>}, {pipeline_mode = #tpu.pipeline_mode<synchronous>, transform_indices = @transform_4, window_bounds = array<i64: 32, 4>}, {pipeline_mode = #tpu.pipeline_mode<synchronous>, transform_indices = @transform_5, window_bounds = array<i64: 1, 1>}, {pipeline_mode = #tpu.pipeline_mode<synchronous>, transform_indices = @transform_6, window_bounds = array<i64: 16, 4>}]} {
    %c0 = arith.constant 0 : index
    %c0_0 = arith.constant 0 : index
    %c0_1 = arith.constant 0 : index
    %0 = vector.load %arg1[%c0, %c0_0, %c0_1] : memref<4x16x3xf32, #tpu.memory_space<vmem>>, vector<1x16x3xf32>
    %1 = vector.shape_cast %0 : vector<1x16x3xf32> to vector<16x3xf32>
    %c0_2 = arith.constant 0 : index
    %c0_3 = arith.constant 0 : index
    %2 = vector.load %arg2[%c0_2, %c0_3] : memref<3x24xf32, #tpu.memory_space<vmem>>, vector<3x24xf32>
    %cst = arith.constant dense<0.000000e+00> : vector<16x24xf32>
    %3 = tpu.matmul %1, %2, %cst {dimension_numbers = #tpu.dot_dimension_numbers<[1], [0], [0], [1], [0, 0, 1, 1], [], []>} : vector<16x3xf32>, vector<3x24xf32>, vector<16x24xf32> -> vector<16x24xf32>
    %c0_4 = arith.constant 0 : index
    %c0_5 = arith.constant 0 : index
    %4 = vector.load %arg3[%c0_4, %c0_5] : memref<1x24xf32, #tpu.memory_space<vmem>>, vector<1x24xf32>
    %5 = vector.broadcast %4 : vector<1x24xf32> to vector<16x24xf32>
    %6 = arith.addf %3, %5 : vector<16x24xf32>
    %7 = vector.extract_strided_slice %6 {offsets = [0, 0], sizes = [16, 8], strides = [1, 1]} : vector<16x24xf32> to vector<16x8xf32>
    %c0_6 = arith.constant 0 : index
    %c0_7 = arith.constant 0 : index
    %8 = vector.load %arg8[%c0_6, %c0_7] : memref<16x32xf32, #tpu.memory_space<vmem>>, vector<16x8xf32>
    tpu.vector_store %arg8[%c0_6, %c0_7], %7 {strides = array<i32>} : memref<16x32xf32, #tpu.memory_space<vmem>>, vector<16x8xf32>,
    %9 = vector.extract_strided_slice %6 {offsets = [0, 8], sizes = [16, 8], strides = [1, 1]} : vector<16x24xf32> to vector<16x8xf32>
    %c0_8 = arith.constant 0 : index
    %c0_9 = arith.constant 0 : index
    %c0_10 = arith.constant 0 : index
    %10 = vector.load %arg9[%c0_8, %c0_9, %c0_10] : memref<2x16x32xf32, #tpu.memory_space<vmem>>, vector<1x16x8xf32>
    %11 = vector.shape_cast %10 : vector<1x16x8xf32> to vector<16x8xf32>
    %12 = vector.shape_cast %9 : vector<16x8xf32> to vector<1x16x8xf32>
    tpu.vector_store %arg9[%c0_8, %c0_9, %c0_10], %12 {strides = array<i32>} : memref<2x16x32xf32, #tpu.memory_space<vmem>>, vector<1x16x8xf32>,
    %13 = vector.extract_strided_slice %6 {offsets = [0, 16], sizes = [16, 8], strides = [1, 1]} : vector<16x24xf32> to vector<16x8xf32>
    %c1 = arith.constant 1 : index
    %c0_11 = arith.constant 0 : index
    %c0_12 = arith.constant 0 : index
    %14 = vector.load %arg9[%c1, %c0_11, %c0_12] : memref<2x16x32xf32, #tpu.memory_space<vmem>>, vector<1x16x8xf32>
    %15 = vector.shape_cast %14 : vector<1x16x8xf32> to vector<16x8xf32>
    %16 = vector.shape_cast %13 : vector<16x8xf32> to vector<1x16x8xf32>
    tpu.vector_store %arg9[%c1, %c0_11, %c0_12], %16 {strides = array<i32>} : memref<2x16x32xf32, #tpu.memory_space<vmem>>, vector<1x16x8xf32>,
    %c1_13 = arith.constant 1 : index
    %c0_14 = arith.constant 0 : index
    %c0_15 = arith.constant 0 : index
    %17 = vector.load %arg1[%c1_13, %c0_14, %c0_15] : memref<4x16x3xf32, #tpu.memory_space<vmem>>, vector<1x16x3xf32>
    %18 = vector.shape_cast %17 : vector<1x16x3xf32> to vector<16x3xf32>
    %c0_16 = arith.constant 0 : index
    %c0_17 = arith.constant 0 : index
    %19 = vector.load %arg2[%c0_16, %c0_17] : memref<3x24xf32, #tpu.memory_space<vmem>>, vector<3x24xf32>
    %cst_18 = arith.constant dense<0.000000e+00> : vector<16x24xf32>
    %20 = tpu.matmul %18, %19, %cst_18 {dimension_numbers = #tpu.dot_dimension_numbers<[1], [0], [0], [1], [0, 0, 1, 1], [], []>} : vector<16x3xf32>, vector<3x24xf32>, vector<16x24xf32> -> vector<16x24xf32>
    %c0_19 = arith.constant 0 : index
    %c0_20 = arith.constant 0 : index
    %21 = vector.load %arg3[%c0_19, %c0_20] : memref<1x24xf32, #tpu.memory_space<vmem>>, vector<1x24xf32>
    %22 = vector.broadcast %21 : vector<1x24xf32> to vector<16x24xf32>
    %23 = arith.addf %20, %22 : vector<16x24xf32>
    %24 = vector.extract_strided_slice %23 {offsets = [0, 0], sizes = [16, 8], strides = [1, 1]} : vector<16x24xf32> to vector<16x8xf32>
    %c0_21 = arith.constant 0 : index
    %c8 = arith.constant 8 : index
    %25 = vector.load %arg8[%c0_21, %c8] : memref<16x32xf32, #tpu.memory_space<vmem>>, vector<16x8xf32>
    tpu.vector_store %arg8[%c0_21, %c8], %24 {strides = array<i32>} : memref<16x32xf32, #tpu.memory_space<vmem>>, vector<16x8xf32>,
    %26 = vector.extract_strided_slice %23 {offsets = [0, 8], sizes = [16, 8], strides = [1, 1]} : vector<16x24xf32> to vector<16x8xf32>
    %c0_22 = arith.constant 0 : index
    %c0_23 = arith.constant 0 : index
    %c8_24 = arith.constant 8 : index
    %27 = vector.load %arg9[%c0_22, %c0_23, %c8_24] : memref<2x16x32xf32, #tpu.memory_space<vmem>>, vector<1x16x8xf32>
    %28 = vector.shape_cast %27 : vector<1x16x8xf32> to vector<16x8xf32>
    %29 = vector.shape_cast %26 : vector<16x8xf32> to vector<1x16x8xf32>
    tpu.vector_store %arg9[%c0_22, %c0_23, %c8_24], %29 {strides = array<i32>} : memref<2x16x32xf32, #tpu.memory_space<vmem>>, vector<1x16x8xf32>,
    %30 = vector.extract_strided_slice %23 {offsets = [0, 16], sizes = [16, 8], strides = [1, 1]} : vector<16x24xf32> to vector<16x8xf32>
    %c1_25 = arith.constant 1 : index
    %c0_26 = arith.constant 0 : index
    %c8_27 = arith.constant 8 : index
    %31 = vector.load %arg9[%c1_25, %c0_26, %c8_27] : memref<2x16x32xf32, #tpu.memory_space<vmem>>, vector<1x16x8xf32>
    %32 = vector.shape_cast %31 : vector<1x16x8xf32> to vector<16x8xf32>
    %33 = vector.shape_cast %30 : vector<16x8xf32> to vector<1x16x8xf32>
    tpu.vector_store %arg9[%c1_25, %c0_26, %c8_27], %33 {strides = array<i32>} : memref<2x16x32xf32, #tpu.memory_space<vmem>>, vector<1x16x8xf32>,
    %c2 = arith.constant 2 : index
    %c0_28 = arith.constant 0 : index
    %c0_29 = arith.constant 0 : index
    %34 = vector.load %arg1[%c2, %c0_28, %c0_29] : memref<4x16x3xf32, #tpu.memory_space<vmem>>, vector<1x16x3xf32>
    %35 = vector.shape_cast %34 : vector<1x16x3xf32> to vector<16x3xf32>
    %c0_30 = arith.constant 0 : index
    %c0_31 = arith.constant 0 : index
    %36 = vector.load %arg2[%c0_30, %c0_31] : memref<3x24xf32, #tpu.memory_space<vmem>>, vector<3x24xf32>
    %cst_32 = arith.constant dense<0.000000e+00> : vector<16x24xf32>
    %37 = tpu.matmul %35, %36, %cst_32 {dimension_numbers = #tpu.dot_dimension_numbers<[1], [0], [0], [1], [0, 0, 1, 1], [], []>} : vector<16x3xf32>, vector<3x24xf32>, vector<16x24xf32> -> vector<16x24xf32>
    %c0_33 = arith.constant 0 : index
    %c0_34 = arith.constant 0 : index
    %38 = vector.load %arg3[%c0_33, %c0_34] : memref<1x24xf32, #tpu.memory_space<vmem>>, vector<1x24xf32>
    %39 = vector.broadcast %38 : vector<1x24xf32> to vector<16x24xf32>
    %40 = arith.addf %37, %39 : vector<16x24xf32>
    %41 = vector.extract_strided_slice %40 {offsets = [0, 0], sizes = [16, 8], strides = [1, 1]} : vector<16x24xf32> to vector<16x8xf32>
    %c0_35 = arith.constant 0 : index
    %c16 = arith.constant 16 : index
    %42 = vector.load %arg8[%c0_35, %c16] : memref<16x32xf32, #tpu.memory_space<vmem>>, vector<16x8xf32>
    tpu.vector_store %arg8[%c0_35, %c16], %41 {strides = array<i32>} : memref<16x32xf32, #tpu.memory_space<vmem>>, vector<16x8xf32>,
    %43 = vector.extract_strided_slice %40 {offsets = [0, 8], sizes = [16, 8], strides = [1, 1]} : vector<16x24xf32> to vector<16x8xf32>
    %c0_36 = arith.constant 0 : index
    %c0_37 = arith.constant 0 : index
    %c16_38 = arith.constant 16 : index
    %44 = vector.load %arg9[%c0_36, %c0_37, %c16_38] : memref<2x16x32xf32, #tpu.memory_space<vmem>>, vector<1x16x8xf32>
    %45 = vector.shape_cast %44 : vector<1x16x8xf32> to vector<16x8xf32>
    %46 = vector.shape_cast %43 : vector<16x8xf32> to vector<1x16x8xf32>
    tpu.vector_store %arg9[%c0_36, %c0_37, %c16_38], %46 {strides = array<i32>} : memref<2x16x32xf32, #tpu.memory_space<vmem>>, vector<1x16x8xf32>,
    %47 = vector.extract_strided_slice %40 {offsets = [0, 16], sizes = [16, 8], strides = [1, 1]} : vector<16x24xf32> to vector<16x8xf32>
    %c1_39 = arith.constant 1 : index
    %c0_40 = arith.constant 0 : index
    %c16_41 = arith.constant 16 : index
    %48 = vector.load %arg9[%c1_39, %c0_40, %c16_41] : memref<2x16x32xf32, #tpu.memory_space<vmem>>, vector<1x16x8xf32>
    %49 = vector.shape_cast %48 : vector<1x16x8xf32> to vector<16x8xf32>
    %50 = vector.shape_cast %47 : vector<16x8xf32> to vector<1x16x8xf32>
    tpu.vector_store %arg9[%c1_39, %c0_40, %c16_41], %50 {strides = array<i32>} : memref<2x16x32xf32, #tpu.memory_space<vmem>>, vector<1x16x8xf32>,
    %c3 = arith.constant 3 : index
    %c0_42 = arith.constant 0 : index
    %c0_43 = arith.constant 0 : index
    %51 = vector.load %arg1[%c3, %c0_42, %c0_43] : memref<4x16x3xf32, #tpu.memory_space<vmem>>, vector<1x16x3xf32>
    %52 = vector.shape_cast %51 : vector<1x16x3xf32> to vector<16x3xf32>
    %c0_44 = arith.constant 0 : index
    %c0_45 = arith.constant 0 : index
    %53 = vector.load %arg2[%c0_44, %c0_45] : memref<3x24xf32, #tpu.memory_space<vmem>>, vector<3x24xf32>
    %cst_46 = arith.constant dense<0.000000e+00> : vector<16x24xf32>
    %54 = tpu.matmul %52, %53, %cst_46 {dimension_numbers = #tpu.dot_dimension_numbers<[1], [0], [0], [1], [0, 0, 1, 1], [], []>} : vector<16x3xf32>, vector<3x24xf32>, vector<16x24xf32> -> vector<16x24xf32>
    %c0_47 = arith.constant 0 : index
    %c0_48 = arith.constant 0 : index
    %55 = vector.load %arg3[%c0_47, %c0_48] : memref<1x24xf32, #tpu.memory_space<vmem>>, vector<1x24xf32>
    %56 = vector.broadcast %55 : vector<1x24xf32> to vector<16x24xf32>
    %57 = arith.addf %54, %56 : vector<16x24xf32>
    %58 = vector.extract_strided_slice %57 {offsets = [0, 0], sizes = [16, 8], strides = [1, 1]} : vector<16x24xf32> to vector<16x8xf32>
    %c0_49 = arith.constant 0 : index
    %c24 = arith.constant 24 : index
    %59 = vector.load %arg8[%c0_49, %c24] : memref<16x32xf32, #tpu.memory_space<vmem>>, vector<16x8xf32>
    tpu.vector_store %arg8[%c0_49, %c24], %58 {strides = array<i32>} : memref<16x32xf32, #tpu.memory_space<vmem>>, vector<16x8xf32>,
    %60 = vector.extract_strided_slice %57 {offsets = [0, 8], sizes = [16, 8], strides = [1, 1]} : vector<16x24xf32> to vector<16x8xf32>
    %c0_50 = arith.constant 0 : index
    %c0_51 = arith.constant 0 : index
    %c24_52 = arith.constant 24 : index
    %61 = vector.load %arg9[%c0_50, %c0_51, %c24_52] : memref<2x16x32xf32, #tpu.memory_space<vmem>>, vector<1x16x8xf32>
    %62 = vector.shape_cast %61 : vector<1x16x8xf32> to vector<16x8xf32>
    %63 = vector.shape_cast %60 : vector<16x8xf32> to vector<1x16x8xf32>
    tpu.vector_store %arg9[%c0_50, %c0_51, %c24_52], %63 {strides = array<i32>} : memref<2x16x32xf32, #tpu.memory_space<vmem>>, vector<1x16x8xf32>,
    %64 = vector.extract_strided_slice %57 {offsets = [0, 16], sizes = [16, 8], strides = [1, 1]} : vector<16x24xf32> to vector<16x8xf32>
    %c1_53 = arith.constant 1 : index
    %c0_54 = arith.constant 0 : index
    %c24_55 = arith.constant 24 : index
    %65 = vector.load %arg9[%c1_53, %c0_54, %c24_55] : memref<2x16x32xf32, #tpu.memory_space<vmem>>, vector<1x16x8xf32>
    %66 = vector.shape_cast %65 : vector<1x16x8xf32> to vector<16x8xf32>
    %67 = vector.shape_cast %64 : vector<16x8xf32> to vector<1x16x8xf32>
    tpu.vector_store %arg9[%c1_53, %c0_54, %c24_55], %67 {strides = array<i32>} : memref<2x16x32xf32, #tpu.memory_space<vmem>>, vector<1x16x8xf32>,
    %c0_56 = arith.constant 0 : index
    %c0_57 = arith.constant 0 : index
    %68 = vector.load %arg8[%c0_56, %c0_57] : memref<16x32xf32, #tpu.memory_space<vmem>>, vector<16x32xf32>
    %c0_58 = arith.constant 0 : index
    %c0_59 = arith.constant 0 : index
    %c0_60 = arith.constant 0 : index
    %69 = vector.load %arg4[%c0_58, %c0_59, %c0_60] : memref<2x16x16xf32, #tpu.memory_space<vmem>>, vector<1x16x16xf32>
    %70 = vector.shape_cast %69 : vector<1x16x16xf32> to vector<16x16xf32>
    %cst_61 = arith.constant dense<0.000000e+00> : vector<16x32xf32>
    %71 = tpu.matmul %70, %68, %cst_61 {dimension_numbers = #tpu.dot_dimension_numbers<[1], [0], [0], [1], [0, 0, 1, 1], [], []>} : vector<16x16xf32>, vector<16x32xf32>, vector<16x32xf32> -> vector<16x32xf32>
    %c0_62 = arith.constant 0 : index
    %c0_63 = arith.constant 0 : index
    %c0_64 = arith.constant 0 : index
    %72 = vector.load %arg9[%c0_62, %c0_63, %c0_64] : memref<2x16x32xf32, #tpu.memory_space<vmem>>, vector<1x16x32xf32>
    %73 = vector.shape_cast %72 : vector<1x16x32xf32> to vector<16x32xf32>
    %74 = arith.mulf %73, %71 : vector<16x32xf32>
    %c1_65 = arith.constant 1 : index
    %c0_66 = arith.constant 0 : index
    %c0_67 = arith.constant 0 : index
    %75 = vector.load %arg4[%c1_65, %c0_66, %c0_67] : memref<2x16x16xf32, #tpu.memory_space<vmem>>, vector<1x16x16xf32>
    %76 = vector.shape_cast %75 : vector<1x16x16xf32> to vector<16x16xf32>
    %cst_68 = arith.constant dense<0.000000e+00> : vector<16x32xf32>
    %77 = tpu.matmul %76, %74, %cst_68 {dimension_numbers = #tpu.dot_dimension_numbers<[1], [0], [0], [1], [0, 0, 1, 1], [], []>} : vector<16x16xf32>, vector<16x32xf32>, vector<16x32xf32> -> vector<16x32xf32>
    %c1_69 = arith.constant 1 : index
    %c0_70 = arith.constant 0 : index
    %c0_71 = arith.constant 0 : index
    %78 = vector.load %arg9[%c1_69, %c0_70, %c0_71] : memref<2x16x32xf32, #tpu.memory_space<vmem>>, vector<1x16x32xf32>
    %79 = vector.shape_cast %78 : vector<1x16x32xf32> to vector<16x32xf32>
    %80 = arith.mulf %79, %77 : vector<16x32xf32>
    %c0_72 = arith.constant 0 : index
    %c0_73 = arith.constant 0 : index
    %81 = vector.load %arg5[%c0_72, %c0_73] : memref<32x4xf32, #tpu.memory_space<vmem>>, vector<32x4xf32>
    %cst_74 = arith.constant dense<0.000000e+00> : vector<16x4xf32>
    %82 = tpu.matmul %80, %81, %cst_74 {dimension_numbers = #tpu.dot_dimension_numbers<[1], [0], [0], [1], [0, 0, 1, 1], [], []>} : vector<16x32xf32>, vector<32x4xf32>, vector<16x4xf32> -> vector<16x4xf32>
    %c0_75 = arith.constant 0 : index
    %c0_76 = arith.constant 0 : index
    %83 = vector.load %arg6[%c0_75, %c0_76] : memref<1x1xf32, #tpu.memory_space<vmem>>, vector<1x1xf32>
    %84 = vector.broadcast %83 : vector<1x1xf32> to vector<16x4xf32>
    %85 = arith.addf %82, %84 : vector<16x4xf32>
    %c0_77 = arith.constant 0 : index
    %c0_78 = arith.constant 0 : index
    %86 = vector.load %arg7[%c0_77, %c0_78] : memref<16x4xf32, #tpu.memory_space<vmem>>, vector<16x4xf32>
    tpu.vector_store %arg7[%c0_77, %c0_78], %85 {strides = array<i32>} : memref<16x4xf32, #tpu.memory_space<vmem>>, vector<16x4xf32>,
    return
  }
  func.func @transform_0(%arg0: i32) -> (i32, i32, i32) {
    %c0_i32 = arith.constant 0 : i32
    %c0_i32_0 = arith.constant 0 : i32
    %c0_i32_1 = arith.constant 0 : i32
    %c0_i32_2 = arith.constant 0 : i32
    return %c0_i32, %c0_i32_0, %c0_i32_1 : i32, i32, i32
  }
  func.func @transform_1(%arg0: i32) -> (i32, i32) {
    %c0_i32 = arith.constant 0 : i32
    %c0_i32_0 = arith.constant 0 : i32
    %c0_i32_1 = arith.constant 0 : i32
    return %c0_i32, %c0_i32_0 : i32, i32
  }
  func.func @transform_2(%arg0: i32) -> (i32, i32) {
    %c0_i32 = arith.constant 0 : i32
    %c0_i32_0 = arith.constant 0 : i32
    %c0_i32_1 = arith.constant 0 : i32
    return %c0_i32, %c0_i32_0 : i32, i32
  }
  func.func @transform_3(%arg0: i32) -> (i32, i32, i32) {
    %c0_i32 = arith.constant 0 : i32
    %c0_i32_0 = arith.constant 0 : i32
    %c0_i32_1 = arith.constant 0 : i32
    %c0_i32_2 = arith.constant 0 : i32
    return %c0_i32, %c0_i32_0, %c0_i32_1 : i32, i32, i32
  }
  func.func @transform_4(%arg0: i32) -> (i32, i32) {
    %c0_i32 = arith.constant 0 : i32
    %c0_i32_0 = arith.constant 0 : i32
    %c0_i32_1 = arith.constant 0 : i32
    return %c0_i32, %c0_i32_0 : i32, i32
  }
  func.func @transform_5(%arg0: i32) -> (i32, i32) {
    %c0_i32 = arith.constant 0 : i32
    %c0_i32_0 = arith.constant 0 : i32
    %c0_i32_1 = arith.constant 0 : i32
    return %c0_i32, %c0_i32_0 : i32, i32
  }
  func.func @transform_6(%arg0: i32) -> (i32, i32) {
    %c0_i32 = arith.constant 0 : i32
    %c0_i32_0 = arith.constant 0 : i32
    %c0_i32_1 = arith.constant 0 : i32
    return %c0_i32, %c0_i32_0 : i32, i32
  }
}

</mosaic_0001>

<llo_original>
// kernel: tpu_custom_call.1
$region0: #{tpu_custom_call.1}
  #allocation0 [shape = 'u32[]', space=smem, size = 0x4, offset = 0x4, fixed_abs, tag = 'smem constant byte address 0x4 - core index']
  #allocation1 [shape = 'u32[144,128]{1,0:T(1,128)}', space=vmem, size = 0x12000, scoped, tag = 'internal scratch']
  #allocation2 [shape = 'f32[16,32]{1,0:T(8,128)}', space=vmem, size = 0x2000, scoped, tag = 'scratch operand']
  #allocation3 [shape = 'f32[2,16,32]{2,1,0:T(8,128)}', space=vmem, size = 0x4000, scoped, tag = 'scratch operand']
  #allocation4 [shape = 'f32[1,1]{1,0:T(1,128)S(1)}', space=vmem, size = 0x200, scoped, tag = 'scoped memory for tpu_custom_call.1']
  %s0 = inlined_call_operand.vmem [shape: f32[4,16,3], index: 0, kind: input, shape index: {}]
  %s1 = inlined_call_operand.vmem [shape: f32[3,24], index: 1, kind: input, shape index: {}]
  %s2 = inlined_call_operand.vmem [shape: f32[1,24], index: 2, kind: input, shape index: {}]
  %s3 = inlined_call_operand.vmem [shape: f32[2,16,16], index: 3, kind: input, shape index: {}]
  %s4 = inlined_call_operand.vmem [shape: f32[32,4], index: 4, kind: input, shape index: {}]
  %s5 = inlined_call_operand.<no memory space> [shape: f32[1,1], index: 5, kind: input, shape index: {}]
  %s6 = inlined_call_operand.vmem [shape: f32[16,4], index: 6, kind: output, shape index: {}]
  %s7 = sld [smem:[#allocation0]]
  $region34: #{tpu_custom_call.1} parent=0
    _
  %s9 = ssub.s32 1, %s7
  %s10 = scalar_select 0, %s9, %s7
  %v11 = vstv %s5
  %12 = vst [vmem:[#allocation4] sm:$0x1] %v11
  // Predicated region
  $region2: #{tpu_custom_call.1} parent=0 // pred_check
    _
  $region3: #{tpu_custom_call.1} parent=0 // pred_check_branch
    %14 = sbr.rel (0) target = $region5
  $region4: #{tpu_custom_call.1} parent=0 // pred_region
    _
  $region5: #{tpu_custom_call.1} parent=0 // pred_fallthru
    _
  // Predicated region
  $region6: #{tpu_custom_call.1} parent=0 // pred_check
    _
  $region7: #{tpu_custom_call.1} parent=0 // pred_check_branch
    %16 = sbr.rel (0) target = $region9
  $region8: #{tpu_custom_call.1} parent=0 // pred_region
    _
  $region9: #{tpu_custom_call.1} parent=0 // pred_fallthru
    _
  // Predicated region
  $region10: #{tpu_custom_call.1} parent=0 // pred_check
    _
  $region11: #{tpu_custom_call.1} parent=0 // pred_check_branch
    %18 = sbr.rel (0) target = $region13
  $region12: #{tpu_custom_call.1} parent=0 // pred_region
    _
  $region13: #{tpu_custom_call.1} parent=0 // pred_fallthru
    _
  // Predicated region
  $region14: #{tpu_custom_call.1} parent=0 // pred_check
    _
  $region15: #{tpu_custom_call.1} parent=0 // pred_check_branch
    %20 = sbr.rel (0) target = $region17
  $region16: #{tpu_custom_call.1} parent=0 // pred_region
    _
  $region17: #{tpu_custom_call.1} parent=0 // pred_fallthru
    _
  // Predicated region
  $region18: #{tpu_custom_call.1} parent=0 // pred_check
    _
  $region19: #{tpu_custom_call.1} parent=0 // pred_check_branch
    %22 = sbr.rel (0) target = $region21
  $region20: #{tpu_custom_call.1} parent=0 // pred_region
    _
  $region21: #{tpu_custom_call.1} parent=0 // pred_fallthru
    _
  // Predicated region
  $region22: #{tpu_custom_call.1} parent=0 // pred_check
    _
  $region23: #{tpu_custom_call.1} parent=0 // pred_check_branch
    %24 = sbr.rel (0) target = $region25
  $region24: #{tpu_custom_call.1} parent=0 // pred_region
    _
  $region25: #{tpu_custom_call.1} parent=0 // pred_fallthru
    _
  %v25 = vld [vmem:[%s0] sm:$0xff]
  %v26 = vld [vmem:[%s0 + $0x8] sm:$0xff]
  %v27 = vld [vmem:[%s1] sm:$0x7]
  %v28 = vld [vmem:[%s2] sm:$0x1]
  %v30 = vlaneseq
  %v31 = vshrl.u32 %v30, 7
  %v32 = vsub.s32 0, %v31
  %v33 = vrot.slane %v28, %v32
  %vm35 = vcmask 23552
  %v37 = vsel %vm35, %v25, 0
  %v40 = vsel %vm35, %v26, 0
  %vm42 = vcmask 1042432
  %v44 = vsel %vm42, %v27, 0
  %46 = vmatprep.subr.mxu0 0.0
  %47 = vmatpush1.msra.mxu0 0.0
  %48 = vmatprep.subr.mxu0 0.0
  %49 = vmatpush1.msra.mxu0 0.0
  %50 = vmatprep.subr.mxu0 0.0
  %51 = vmatpush1.msra.mxu0 0.0
  %52 = vmatprep.subr.mxu0 0.0
  %53 = vmatpush1.msra.mxu0 0.0
  %54 = vmatprep.subr.mxu0 0.0
  %55 = vmatpush1.msra.mxu0 0.0
  %56 = vmatprep.subr.mxu0 0.0
  %57 = vmatpush1.msra.mxu0 0.0
  %58 = vmatprep.subr.mxu0 0.0
  %59 = vmatpush1.msra.mxu0 0.0
  %60 = vmatprep.subr.mxu0 0.0
  %61 = vmatpush1.msra.mxu0 0.0
  %62 = vmatprep.subr.mxu0 0.0
  %63 = vmatpush1.msra.mxu0 0.0
  %64 = vmatprep.subr.mxu0 0.0
  %65 = vmatpush1.msra.mxu0 0.0
  %66 = vmatprep.subr.mxu0 0.0
  %67 = vmatpush1.msra.mxu0 0.0
  %68 = vmatprep.subr.mxu0 0.0
  %69 = vmatpush1.msra.mxu0 0.0
  %70 = vmatprep.subr.mxu0 0.0
  %71 = vmatpush1.msra.mxu0 0.0
  %72 = vmatprep.subr.mxu0 0.0
  %73 = vmatpush1.msra.mxu0 0.0
  %74 = vmatprep.subr.mxu0 0.0
  %75 = vmatpush1.msra.mxu0 0.0
  %76 = vmatprep.subr.mxu0 0.0
  %77 = vmatpush1.msra.mxu0 %v44
  %78 = vmatprep.subr.mxu0 0.0
  %79 = vmatpush2.msra.mxu0 0.0
  %80 = vmatprep.subr.mxu0 0.0
  %81 = vmatpush2.msra.mxu0 0.0
  %82 = vmatprep.subr.mxu0 0.0
  %83 = vmatpush2.msra.mxu0 0.0
  %84 = vmatprep.subr.mxu0 0.0
  %85 = vmatpush2.msra.mxu0 0.0
  %86 = vmatprep.subr.mxu0 0.0
  %87 = vmatpush2.msra.mxu0 0.0
  %88 = vmatprep.subr.mxu0 0.0
  %89 = vmatpush2.msra.mxu0 0.0
  %90 = vmatprep.subr.mxu0 0.0
  %91 = vmatpush2.msra.mxu0 0.0
  %92 = vmatprep.subr.mxu0 0.0
  %93 = vmatpush2.msra.mxu0 0.0
  %94 = vmatprep.subr.mxu0 0.0
  %95 = vmatpush2.msra.mxu0 0.0
  %96 = vmatprep.subr.mxu0 0.0
  %97 = vmatpush2.msra.mxu0 0.0
  %98 = vmatprep.subr.mxu0 0.0
  %99 = vmatpush2.msra.mxu0 0.0
  %100 = vmatprep.subr.mxu0 0.0
  %101 = vmatpush2.msra.mxu0 0.0
  %102 = vmatprep.subr.mxu0 0.0
  %103 = vmatpush2.msra.mxu0 0.0
  %104 = vmatprep.subr.mxu0 0.0
  %105 = vmatpush2.msra.mxu0 0.0
  %106 = vmatprep.subr.mxu0 0.0
  %107 = vmatpush2.msra.mxu0 0.0
  %108 = vmatprep.subr.mxu0 0.0
  %109 = vmatpush2.msra.mxu0 0.0
  %110 = vmatprep.mubr.f32.mxu0 0.0
  %111 = vmatmul.mubr.f32.gmra.mxu0 %v37
  %v112 = vpop.f32.mrf.mxu0
  %v113 = vadd.f32 %v33, %v112
  %v114 = vpop.f32.mrf.mxu0
  %115 = vmatprep.mubr.f32.mxu0 0.0
  %116 = vmatmul.mubr.f32.gmra.mxu0 %v40
  %v117 = vpop.f32.mrf.mxu0
  %v118 = vadd.f32 %v33, %v117
  %v119 = vpop.f32.mrf.mxu0
  %120 = vdwg.mxu0
  %vm121 = vcmask 64512
  %122 = vst.msk [vmem:[#allocation2] sm:$0xff] %vm121, %v113
  %123 = vst.msk [vmem:[#allocation2 + $0x8] sm:$0xff] %vm121, %v118
  %126 = vrot.lane.b32.xlu0 %v113, 120
  %v127 = vpop.permute.xlu0 %126
  %128 = vrot.lane.b32.xlu0 %v118, 120
  %v129 = vpop.permute.xlu0 %128
  %132 = vst.msk [vmem:[#allocation3] sm:$0xff] %vm121, %v127
  %133 = vst.msk [vmem:[#allocation3 + $0x8] sm:$0xff] %vm121, %v129
  %134 = vrot.lane.b32.xlu0 %v113, 112
  %v135 = vpop.permute.xlu0 %134
  %136 = vrot.lane.b32.xlu0 %v118, 112
  %v137 = vpop.permute.xlu0 %136
  %s140 = scalar_lea.vmem [#allocation3], 16
  %141 = vst.msk [vmem:[%s140] sm:$0xff] %vm121, %v135
  %142 = vst.msk [vmem:[%s140 + $0x8] sm:$0xff] %vm121, %v137
  %s143 = scalar_lea.vmem %s0, 16
  %v144 = vld [vmem:[%s143] sm:$0xff]
  %v145 = vld [vmem:[%s143 + $0x8] sm:$0xff]
  %v146 = vld [vmem:[%s1] sm:$0x7]
  %v147 = vld [vmem:[%s2] sm:$0x1]
  %v149 = vlaneseq
  %v150 = vshrl.u32 %v149, 7
  %v151 = vsub.s32 0, %v150
  %v152 = vrot.slane %v147, %v151
  %v155 = vsel %vm35, %v144, 0
  %v158 = vsel %vm35, %v145, 0
  %v161 = vsel %vm42, %v146, 0
  %163 = vmatprep.subr.mxu0 0.0
  %164 = vmatpush1.msra.mxu0 0.0
  %165 = vmatprep.subr.mxu0 0.0
  %166 = vmatpush1.msra.mxu0 0.0
  %167 = vmatprep.subr.mxu0 0.0
  %168 = vmatpush1.msra.mxu0 0.0
  %169 = vmatprep.subr.mxu0 0.0
  %170 = vmatpush1.msra.mxu0 0.0
  %171 = vmatprep.subr.mxu0 0.0
  %172 = vmatpush1.msra.mxu0 0.0
  %173 = vmatprep.subr.mxu0 0.0
  %174 = vmatpush1.msra.mxu0 0.0
  %175 = vmatprep.subr.mxu0 0.0
  %176 = vmatpush1.msra.mxu0 0.0
  %177 = vmatprep.subr.mxu0 0.0
  %178 = vmatpush1.msra.mxu0 0.0
  %179 = vmatprep.subr.mxu0 0.0
  %180 = vmatpush1.msra.mxu0 0.0
  %181 = vmatprep.subr.mxu0 0.0
  %182 = vmatpush1.msra.mxu0 0.0
  %183 = vmatprep.subr.mxu0 0.0
  %184 = vmatpush1.msra.mxu0 0.0
  %185 = vmatprep.subr.mxu0 0.0
  %186 = vmatpush1.msra.mxu0 0.0
  %187 = vmatprep.subr.mxu0 0.0
  %188 = vmatpush1.msra.mxu0 0.0
  %189 = vmatprep.subr.mxu0 0.0
  %190 = vmatpush1.msra.mxu0 0.0
  %191 = vmatprep.subr.mxu0 0.0
  %192 = vmatpush1.msra.mxu0 0.0
  %193 = vmatprep.subr.mxu0 0.0
  %194 = vmatpush1.msra.mxu0 %v161
  %195 = vmatprep.subr.mxu0 0.0
  %196 = vmatpush2.msra.mxu0 0.0
  %197 = vmatprep.subr.mxu0 0.0
  %198 = vmatpush2.msra.mxu0 0.0
  %199 = vmatprep.subr.mxu0 0.0
  %200 = vmatpush2.msra.mxu0 0.0
  %201 = vmatprep.subr.mxu0 0.0
  %202 = vmatpush2.msra.mxu0 0.0
  %203 = vmatprep.subr.mxu0 0.0
  %204 = vmatpush2.msra.mxu0 0.0
  %205 = vmatprep.subr.mxu0 0.0
  %206 = vmatpush2.msra.mxu0 0.0
  %207 = vmatprep.subr.mxu0 0.0
  %208 = vmatpush2.msra.mxu0 0.0
  %209 = vmatprep.subr.mxu0 0.0
  %210 = vmatpush2.msra.mxu0 0.0
  %211 = vmatprep.subr.mxu0 0.0
  %212 = vmatpush2.msra.mxu0 0.0
  %213 = vmatprep.subr.mxu0 0.0
  %214 = vmatpush2.msra.mxu0 0.0
  %215 = vmatprep.subr.mxu0 0.0
  %216 = vmatpush2.msra.mxu0 0.0
  %217 = vmatprep.subr.mxu0 0.0
  %218 = vmatpush2.msra.mxu0 0.0
  %219 = vmatprep.subr.mxu0 0.0
  %220 = vmatpush2.msra.mxu0 0.0
  %221 = vmatprep.subr.mxu0 0.0
  %222 = vmatpush2.msra.mxu0 0.0
  %223 = vmatprep.subr.mxu0 0.0
  %224 = vmatpush2.msra.mxu0 0.0
  %225 = vmatprep.subr.mxu0 0.0
  %226 = vmatpush2.msra.mxu0 0.0
  %227 = vmatprep.mubr.f32.mxu0 0.0
  %228 = vmatmul.mubr.f32.gmra.mxu0 %v155
  %v229 = vpop.f32.mrf.mxu0
  %v230 = vadd.f32 %v152, %v229
  %v231 = vpop.f32.mrf.mxu0
  %232 = vmatprep.mubr.f32.mxu0 0.0
  %233 = vmatmul.mubr.f32.gmra.mxu0 %v158
  %v234 = vpop.f32.mrf.mxu0
  %v235 = vadd.f32 %v152, %v234
  %v236 = vpop.f32.mrf.mxu0
  %237 = vdwg.mxu0
  %240 = vrot.lane.b32.xlu0 %v230, 8
  %v241 = vpop.permute.xlu0 %240
  %242 = vrot.lane.b32.xlu0 %v235, 8
  %v243 = vpop.permute.xlu0 %242
  %vm246 = vcmask 130112
  %247 = vst.msk [vmem:[#allocation2] sm:$0xff] %vm246, %v241
  %248 = vst.msk [vmem:[#allocation2 + $0x8] sm:$0xff] %vm246, %v243
  %249 = vst.msk [vmem:[#allocation3] sm:$0xff] %vm246, %v230
  %250 = vst.msk [vmem:[#allocation3 + $0x8] sm:$0xff] %vm246, %v235
  %251 = vrot.lane.b32.xlu0 %v230, 120
  %v252 = vpop.permute.xlu0 %251
  %253 = vrot.lane.b32.xlu0 %v235, 120
  %v254 = vpop.permute.xlu0 %253
  %257 = vst.msk [vmem:[%s140] sm:$0xff] %vm246, %v252
  %258 = vst.msk [vmem:[%s140 + $0x8] sm:$0xff] %vm246, %v254
  %s259 = scalar_lea.vmem %s0, 32
  %v260 = vld [vmem:[%s259] sm:$0xff]
  %v261 = vld [vmem:[%s259 + $0x8] sm:$0xff]
  %v262 = vld [vmem:[%s1] sm:$0x7]
  %v263 = vld [vmem:[%s2] sm:$0x1]
  %v265 = vlaneseq
  %v266 = vshrl.u32 %v265, 7
  %v267 = vsub.s32 0, %v266
  %v268 = vrot.slane %v263, %v267
  %v271 = vsel %vm35, %v260, 0
  %v274 = vsel %vm35, %v261, 0
  %v277 = vsel %vm42, %v262, 0
  %279 = vmatprep.subr.mxu0 0.0
  %280 = vmatpush1.msra.mxu0 0.0
  %281 = vmatprep.subr.mxu0 0.0
  %282 = vmatpush1.msra.mxu0 0.0
  %283 = vmatprep.subr.mxu0 0.0
  %284 = vmatpush1.msra.mxu0 0.0
  %285 = vmatprep.subr.mxu0 0.0
  %286 = vmatpush1.msra.mxu0 0.0
  %287 = vmatprep.subr.mxu0 0.0
  %288 = vmatpush1.msra.mxu0 0.0
  %289 = vmatprep.subr.mxu0 0.0
  %290 = vmatpush1.msra.mxu0 0.0
  %291 = vmatprep.subr.mxu0 0.0
  %292 = vmatpush1.msra.mxu0 0.0
  %293 = vmatprep.subr.mxu0 0.0
  %294 = vmatpush1.msra.mxu0 0.0
  %295 = vmatprep.subr.mxu0 0.0
  %296 = vmatpush1.msra.mxu0 0.0
  %297 = vmatprep.subr.mxu0 0.0
  %298 = vmatpush1.msra.mxu0 0.0
  %299 = vmatprep.subr.mxu0 0.0
  %300 = vmatpush1.msra.mxu0 0.0
  %301 = vmatprep.subr.mxu0 0.0
  %302 = vmatpush1.msra.mxu0 0.0
  %303 = vmatprep.subr.mxu0 0.0
  %304 = vmatpush1.msra.mxu0 0.0
  %305 = vmatprep.subr.mxu0 0.0
  %306 = vmatpush1.msra.mxu0 0.0
  %307 = vmatprep.subr.mxu0 0.0
  %308 = vmatpush1.msra.mxu0 0.0
  %309 = vmatprep.subr.mxu0 0.0
  %310 = vmatpush1.msra.mxu0 %v277
  %311 = vmatprep.subr.mxu0 0.0
  %312 = vmatpush2.msra.mxu0 0.0
  %313 = vmatprep.subr.mxu0 0.0
  %314 = vmatpush2.msra.mxu0 0.0
  %315 = vmatprep.subr.mxu0 0.0
  %316 = vmatpush2.msra.mxu0 0.0
  %317 = vmatprep.subr.mxu0 0.0
  %318 = vmatpush2.msra.mxu0 0.0
  %319 = vmatprep.subr.mxu0 0.0
  %320 = vmatpush2.msra.mxu0 0.0
  %321 = vmatprep.subr.mxu0 0.0
  %322 = vmatpush2.msra.mxu0 0.0
  %323 = vmatprep.subr.mxu0 0.0
  %324 = vmatpush2.msra.mxu0 0.0
  %325 = vmatprep.subr.mxu0 0.0
  %326 = vmatpush2.msra.mxu0 0.0
  %327 = vmatprep.subr.mxu0 0.0
  %328 = vmatpush2.msra.mxu0 0.0
  %329 = vmatprep.subr.mxu0 0.0
  %330 = vmatpush2.msra.mxu0 0.0
  %331 = vmatprep.subr.mxu0 0.0
  %332 = vmatpush2.msra.mxu0 0.0
  %333 = vmatprep.subr.mxu0 0.0
  %334 = vmatpush2.msra.mxu0 0.0
  %335 = vmatprep.subr.mxu0 0.0
  %336 = vmatpush2.msra.mxu0 0.0
  %337 = vmatprep.subr.mxu0 0.0
  %338 = vmatpush2.msra.mxu0 0.0
  %339 = vmatprep.subr.mxu0 0.0
  %340 = vmatpush2.msra.mxu0 0.0
  %341 = vmatprep.subr.mxu0 0.0
  %342 = vmatpush2.msra.mxu0 0.0
  %343 = vmatprep.mubr.f32.mxu0 0.0
  %344 = vmatmul.mubr.f32.gmra.mxu0 %v271
  %v345 = vpop.f32.mrf.mxu0
  %v346 = vadd.f32 %v268, %v345
  %v347 = vpop.f32.mrf.mxu0
  %348 = vmatprep.mubr.f32.mxu0 0.0
  %349 = vmatmul.mubr.f32.gmra.mxu0 %v274
  %v350 = vpop.f32.mrf.mxu0
  %v351 = vadd.f32 %v268, %v350
  %v352 = vpop.f32.mrf.mxu0
  %353 = vdwg.mxu0
  %356 = vrot.lane.b32.xlu0 %v346, 16
  %v357 = vpop.permute.xlu0 %356
  %358 = vrot.lane.b32.xlu0 %v351, 16
  %v359 = vpop.permute.xlu0 %358
  %vm362 = vcmask 195712
  %363 = vst.msk [vmem:[#allocation2] sm:$0xff] %vm362, %v357
  %364 = vst.msk [vmem:[#allocation2 + $0x8] sm:$0xff] %vm362, %v359
  %365 = vrot.lane.b32.xlu0 %v346, 8
  %v366 = vpop.permute.xlu0 %365
  %367 = vrot.lane.b32.xlu0 %v351, 8
  %v368 = vpop.permute.xlu0 %367
  %371 = vst.msk [vmem:[#allocation3] sm:$0xff] %vm362, %v366
  %372 = vst.msk [vmem:[#allocation3 + $0x8] sm:$0xff] %vm362, %v368
  %373 = vst.msk [vmem:[%s140] sm:$0xff] %vm362, %v346
  %374 = vst.msk [vmem:[%s140 + $0x8] sm:$0xff] %vm362, %v351
  %s375 = scalar_lea.vmem %s0, 48
  %v376 = vld [vmem:[%s375] sm:$0xff]
  %v377 = vld [vmem:[%s375 + $0x8] sm:$0xff]
  %v378 = vld [vmem:[%s1] sm:$0x7]
  %v379 = vld [vmem:[%s2] sm:$0x1]
  %v381 = vlaneseq
  %v382 = vshrl.u32 %v381, 7
  %v383 = vsub.s32 0, %v382
  %v384 = vrot.slane %v379, %v383
  %v387 = vsel %vm35, %v376, 0
  %v390 = vsel %vm35, %v377, 0
  %v393 = vsel %vm42, %v378, 0
  %395 = vmatprep.subr.mxu0 0.0
  %396 = vmatpush1.msra.mxu0 0.0
  %397 = vmatprep.subr.mxu0 0.0
  %398 = vmatpush1.msra.mxu0 0.0
  %399 = vmatprep.subr.mxu0 0.0
  %400 = vmatpush1.msra.mxu0 0.0
  %401 = vmatprep.subr.mxu0 0.0
  %402 = vmatpush1.msra.mxu0 0.0
  %403 = vmatprep.subr.mxu0 0.0
  %404 = vmatpush1.msra.mxu0 0.0
  %405 = vmatprep.subr.mxu0 0.0
  %406 = vmatpush1.msra.mxu0 0.0
  %407 = vmatprep.subr.mxu0 0.0
  %408 = vmatpush1.msra.mxu0 0.0
  %409 = vmatprep.subr.mxu0 0.0
  %410 = vmatpush1.msra.mxu0 0.0
  %411 = vmatprep.subr.mxu0 0.0
  %412 = vmatpush1.msra.mxu0 0.0
  %413 = vmatprep.subr.mxu0 0.0
  %414 = vmatpush1.msra.mxu0 0.0
  %415 = vmatprep.subr.mxu0 0.0
  %416 = vmatpush1.msra.mxu0 0.0
  %417 = vmatprep.subr.mxu0 0.0
  %418 = vmatpush1.msra.mxu0 0.0
  %419 = vmatprep.subr.mxu0 0.0
  %420 = vmatpush1.msra.mxu0 0.0
  %421 = vmatprep.subr.mxu0 0.0
  %422 = vmatpush1.msra.mxu0 0.0
  %423 = vmatprep.subr.mxu0 0.0
  %424 = vmatpush1.msra.mxu0 0.0
  %425 = vmatprep.subr.mxu0 0.0
  %426 = vmatpush1.msra.mxu0 %v393
  %427 = vmatprep.subr.mxu0 0.0
  %428 = vmatpush2.msra.mxu0 0.0
  %429 = vmatprep.subr.mxu0 0.0
  %430 = vmatpush2.msra.mxu0 0.0
  %431 = vmatprep.subr.mxu0 0.0
  %432 = vmatpush2.msra.mxu0 0.0
  %433 = vmatprep.subr.mxu0 0.0
  %434 = vmatpush2.msra.mxu0 0.0
  %435 = vmatprep.subr.mxu0 0.0
  %436 = vmatpush2.msra.mxu0 0.0
  %437 = vmatprep.subr.mxu0 0.0
  %438 = vmatpush2.msra.mxu0 0.0
  %439 = vmatprep.subr.mxu0 0.0
  %440 = vmatpush2.msra.mxu0 0.0
  %441 = vmatprep.subr.mxu0 0.0
  %442 = vmatpush2.msra.mxu0 0.0
  %443 = vmatprep.subr.mxu0 0.0
  %444 = vmatpush2.msra.mxu0 0.0
  %445 = vmatprep.subr.mxu0 0.0
  %446 = vmatpush2.msra.mxu0 0.0
  %447 = vmatprep.subr.mxu0 0.0
  %448 = vmatpush2.msra.mxu0 0.0
  %449 = vmatprep.subr.mxu0 0.0
  %450 = vmatpush2.msra.mxu0 0.0
  %451 = vmatprep.subr.mxu0 0.0
  %452 = vmatpush2.msra.mxu0 0.0
  %453 = vmatprep.subr.mxu0 0.0
  %454 = vmatpush2.msra.mxu0 0.0
  %455 = vmatprep.subr.mxu0 0.0
  %456 = vmatpush2.msra.mxu0 0.0
  %457 = vmatprep.subr.mxu0 0.0
  %458 = vmatpush2.msra.mxu0 0.0
  %459 = vmatprep.mubr.f32.mxu0 0.0
  %460 = vmatmul.mubr.f32.gmra.mxu0 %v387
  %v461 = vpop.f32.mrf.mxu0
  %v462 = vadd.f32 %v384, %v461
  %v463 = vpop.f32.mrf.mxu0
  %464 = vmatprep.mubr.f32.mxu0 0.0
  %465 = vmatmul.mubr.f32.gmra.mxu0 %v390
  %v466 = vpop.f32.mrf.mxu0
  %v467 = vadd.f32 %v384, %v466
  %v468 = vpop.f32.mrf.mxu0
  %469 = vdwg.mxu0
  %472 = vrot.lane.b32.xlu0 %v462, 24
  %v473 = vpop.permute.xlu0 %472
  %474 = vrot.lane.b32.xlu0 %v467, 24
  %v475 = vpop.permute.xlu0 %474
  %vm478 = vcmask 261312
  %479 = vst.msk [vmem:[#allocation2] sm:$0xff] %vm478, %v473
  %480 = vst.msk [vmem:[#allocation2 + $0x8] sm:$0xff] %vm478, %v475
  %481 = vrot.lane.b32.xlu0 %v462, 16
  %v482 = vpop.permute.xlu0 %481
  %483 = vrot.lane.b32.xlu0 %v467, 16
  %v484 = vpop.permute.xlu0 %483
  %487 = vst.msk [vmem:[#allocation3] sm:$0xff] %vm478, %v482
  %488 = vst.msk [vmem:[#allocation3 + $0x8] sm:$0xff] %vm478, %v484
  %489 = vrot.lane.b32.xlu0 %v462, 8
  %v490 = vpop.permute.xlu0 %489
  %491 = vrot.lane.b32.xlu0 %v467, 8
  %v492 = vpop.permute.xlu0 %491
  %495 = vst.msk [vmem:[%s140] sm:$0xff] %vm478, %v490
  %496 = vst.msk [vmem:[%s140 + $0x8] sm:$0xff] %vm478, %v492
  %v497 = vld [vmem:[#allocation2] sm:$0xff]
  %v498 = vld [vmem:[#allocation2 + $0x8] sm:$0xff]
  %v499 = vld [vmem:[%s3] sm:$0xff]
  %v500 = vld [vmem:[%s3 + $0x8] sm:$0xff]
  %vm501 = vcmask 130048
  %v503 = vsel %vm501, %v499, 0
  %v506 = vsel %vm501, %v500, 0
  %508 = vmatprep.subr.mxu0 0.0
  %509 = vmatpush1.msra.mxu0 0.0
  %510 = vmatprep.subr.mxu0 0.0
  %511 = vmatpush1.msra.mxu0 0.0
  %512 = vmatprep.subr.mxu0 0.0
  %513 = vmatpush1.msra.mxu0 0.0
  %514 = vmatprep.subr.mxu0 0.0
  %515 = vmatpush1.msra.mxu0 0.0
  %516 = vmatprep.subr.mxu0 0.0
  %517 = vmatpush1.msra.mxu0 0.0
  %518 = vmatprep.subr.mxu0 0.0
  %519 = vmatpush1.msra.mxu0 0.0
  %520 = vmatprep.subr.mxu0 0.0
  %521 = vmatpush1.msra.mxu0 0.0
  %522 = vmatprep.subr.mxu0 0.0
  %523 = vmatpush1.msra.mxu0 0.0
  %524 = vmatprep.subr.mxu0 0.0
  %525 = vmatpush1.msra.mxu0 0.0
  %526 = vmatprep.subr.mxu0 0.0
  %527 = vmatpush1.msra.mxu0 0.0
  %528 = vmatprep.subr.mxu0 0.0
  %529 = vmatpush1.msra.mxu0 0.0
  %530 = vmatprep.subr.mxu0 0.0
  %531 = vmatpush1.msra.mxu0 0.0
  %532 = vmatprep.subr.mxu0 0.0
  %533 = vmatpush1.msra.mxu0 0.0
  %534 = vmatprep.subr.mxu0 0.0
  %535 = vmatpush1.msra.mxu0 0.0
  %536 = vmatprep.subr.mxu0 0.0
  %537 = vmatpush1.msra.mxu0 %v498
  %538 = vmatprep.subr.mxu0 0.0
  %539 = vmatpush1.msra.mxu0 %v497
  %540 = vmatprep.subr.mxu0 0.0
  %541 = vmatpush2.msra.mxu0 0.0
  %542 = vmatprep.subr.mxu0 0.0
  %543 = vmatpush2.msra.mxu0 0.0
  %544 = vmatprep.subr.mxu0 0.0
  %545 = vmatpush2.msra.mxu0 0.0
  %546 = vmatprep.subr.mxu0 0.0
  %547 = vmatpush2.msra.mxu0 0.0
  %548 = vmatprep.subr.mxu0 0.0
  %549 = vmatpush2.msra.mxu0 0.0
  %550 = vmatprep.subr.mxu0 0.0
  %551 = vmatpush2.msra.mxu0 0.0
  %552 = vmatprep.subr.mxu0 0.0
  %553 = vmatpush2.msra.mxu0 0.0
  %554 = vmatprep.subr.mxu0 0.0
  %555 = vmatpush2.msra.mxu0 0.0
  %556 = vmatprep.subr.mxu0 0.0
  %557 = vmatpush2.msra.mxu0 0.0
  %558 = vmatprep.subr.mxu0 0.0
  %559 = vmatpush2.msra.mxu0 0.0
  %560 = vmatprep.subr.mxu0 0.0
  %561 = vmatpush2.msra.mxu0 0.0
  %562 = vmatprep.subr.mxu0 0.0
  %563 = vmatpush2.msra.mxu0 0.0
  %564 = vmatprep.subr.mxu0 0.0
  %565 = vmatpush2.msra.mxu0 0.0
  %566 = vmatprep.subr.mxu0 0.0
  %567 = vmatpush2.msra.mxu0 0.0
  %568 = vmatprep.subr.mxu0 0.0
  %569 = vmatpush2.msra.mxu0 0.0
  %570 = vmatprep.subr.mxu0 0.0
  %571 = vmatpush2.msra.mxu0 0.0
  %572 = vmatprep.mubr.f32.mxu0 0.0
  %573 = vmatmul.mubr.f32.gmra.mxu0 %v503
  %v574 = vpop.f32.mrf.mxu0
  %v575 = vadd.f32 0.0, %v574
  %v576 = vpop.f32.mrf.mxu0
  %577 = vmatprep.mubr.f32.mxu0 0.0
  %578 = vmatmul.mubr.f32.gmra.mxu0 %v506
  %v579 = vpop.f32.mrf.mxu0
  %v580 = vadd.f32 0.0, %v579
  %v581 = vpop.f32.mrf.mxu0
  %582 = vdwg.mxu0
  %v583 = vld [vmem:[#allocation3] sm:$0xff]
  %v584 = vld [vmem:[#allocation3 + $0x8] sm:$0xff]
  %v585 = vmul.f32 %v583, %v575
  %v586 = vmul.f32 %v584, %v580
  %s587 = scalar_lea.vmem %s3, 16
  %v588 = vld [vmem:[%s587] sm:$0xff]
  %v589 = vld [vmem:[%s587 + $0x8] sm:$0xff]
  %v591 = vsel %vm501, %v588, 0
  %v594 = vsel %vm501, %v589, 0
  %596 = vmatprep.subr.mxu0 0.0
  %597 = vmatpush1.msra.mxu0 0.0
  %598 = vmatprep.subr.mxu0 0.0
  %599 = vmatpush1.msra.mxu0 0.0
  %600 = vmatprep.subr.mxu0 0.0
  %601 = vmatpush1.msra.mxu0 0.0
  %602 = vmatprep.subr.mxu0 0.0
  %603 = vmatpush1.msra.mxu0 0.0
  %604 = vmatprep.subr.mxu0 0.0
  %605 = vmatpush1.msra.mxu0 0.0
  %606 = vmatprep.subr.mxu0 0.0
  %607 = vmatpush1.msra.mxu0 0.0
  %608 = vmatprep.subr.mxu0 0.0
  %609 = vmatpush1.msra.mxu0 0.0
  %610 = vmatprep.subr.mxu0 0.0
  %611 = vmatpush1.msra.mxu0 0.0
  %612 = vmatprep.subr.mxu0 0.0
  %613 = vmatpush1.msra.mxu0 0.0
  %614 = vmatprep.subr.mxu0 0.0
  %615 = vmatpush1.msra.mxu0 0.0
  %616 = vmatprep.subr.mxu0 0.0
  %617 = vmatpush1.msra.mxu0 0.0
  %618 = vmatprep.subr.mxu0 0.0
  %619 = vmatpush1.msra.mxu0 0.0
  %620 = vmatprep.subr.mxu0 0.0
  %621 = vmatpush1.msra.mxu0 0.0
  %622 = vmatprep.subr.mxu0 0.0
  %623 = vmatpush1.msra.mxu0 0.0
  %624 = vmatprep.subr.mxu0 0.0
  %625 = vmatpush1.msra.mxu0 %v586
  %626 = vmatprep.subr.mxu0 0.0
  %627 = vmatpush1.msra.mxu0 %v585
  %628 = vmatprep.subr.mxu0 0.0
  %629 = vmatpush2.msra.mxu0 0.0
  %630 = vmatprep.subr.mxu0 0.0
  %631 = vmatpush2.msra.mxu0 0.0
  %632 = vmatprep.subr.mxu0 0.0
  %633 = vmatpush2.msra.mxu0 0.0
  %634 = vmatprep.subr.mxu0 0.0
  %635 = vmatpush2.msra.mxu0 0.0
  %636 = vmatprep.subr.mxu0 0.0
  %637 = vmatpush2.msra.mxu0 0.0
  %638 = vmatprep.subr.mxu0 0.0
  %639 = vmatpush2.msra.mxu0 0.0
  %640 = vmatprep.subr.mxu0 0.0
  %641 = vmatpush2.msra.mxu0 0.0
  %642 = vmatprep.subr.mxu0 0.0
  %643 = vmatpush2.msra.mxu0 0.0
  %644 = vmatprep.subr.mxu0 0.0
  %645 = vmatpush2.msra.mxu0 0.0
  %646 = vmatprep.subr.mxu0 0.0
  %647 = vmatpush2.msra.mxu0 0.0
  %648 = vmatprep.subr.mxu0 0.0
  %649 = vmatpush2.msra.mxu0 0.0
  %650 = vmatprep.subr.mxu0 0.0
  %651 = vmatpush2.msra.mxu0 0.0
  %652 = vmatprep.subr.mxu0 0.0
  %653 = vmatpush2.msra.mxu0 0.0
  %654 = vmatprep.subr.mxu0 0.0
  %655 = vmatpush2.msra.mxu0 0.0
  %656 = vmatprep.subr.mxu0 0.0
  %657 = vmatpush2.msra.mxu0 0.0
  %658 = vmatprep.subr.mxu0 0.0
  %659 = vmatpush2.msra.mxu0 0.0
  %660 = vmatprep.mubr.f32.mxu0 0.0
  %661 = vmatmul.mubr.f32.gmra.mxu0 %v591
  %v662 = vpop.f32.mrf.mxu0
  %v663 = vadd.f32 0.0, %v662
  %v664 = vpop.f32.mrf.mxu0
  %665 = vmatprep.mubr.f32.mxu0 0.0
  %666 = vmatmul.mubr.f32.gmra.mxu0 %v594
  %v667 = vpop.f32.mrf.mxu0
  %v668 = vadd.f32 0.0, %v667
  %v669 = vpop.f32.mrf.mxu0
  %670 = vdwg.mxu0
  %v671 = vld [vmem:[%s140] sm:$0xff]
  %v672 = vld [vmem:[%s140 + $0x8] sm:$0xff]
  %v673 = vmul.f32 %v671, %v663
  %v674 = vmul.f32 %v672, %v668
  %v675 = vld [vmem:[%s4] sm:$0xff]
  %v676 = vld [vmem:[%s4 + $0x8] sm:$0xff]
  %v677 = vld [vmem:[%s4 + $0x10] sm:$0xff]
  %v678 = vld [vmem:[%s4 + $0x18] sm:$0xff]
  %v679 = vld [vmem:[#allocation4] sm:$0x1]
  %v681 = vlaneseq
  %v682 = vshrl.u32 %v681, 7
  %v683 = vsub.s32 0, %v682
  %v684 = vrot.slane %v679, %v683
  %685 = vset.pattern.permute.xlu0 0
  %686 = vperm.xlu0 %685, %v684
  %v687 = vpop.permute.xlu0 %686
  %vm689 = vcmask 261120
  %v691 = vsel %vm689, %v673, 0
  %v694 = vsel %vm689, %v674, 0
  %696 = vmatprep.subr.mxu0 0.0
  %697 = vmatpush1.msra.mxu0 0.0
  %698 = vmatprep.subr.mxu0 0.0
  %699 = vmatpush1.msra.mxu0 0.0
  %700 = vmatprep.subr.mxu0 0.0
  %701 = vmatpush1.msra.mxu0 0.0
  %702 = vmatprep.subr.mxu0 0.0
  %703 = vmatpush1.msra.mxu0 0.0
  %704 = vmatprep.subr.mxu0 0.0
  %705 = vmatpush1.msra.mxu0 0.0
  %706 = vmatprep.subr.mxu0 0.0
  %707 = vmatpush1.msra.mxu0 0.0
  %708 = vmatprep.subr.mxu0 0.0
  %709 = vmatpush1.msra.mxu0 0.0
  %710 = vmatprep.subr.mxu0 0.0
  %711 = vmatpush1.msra.mxu0 0.0
  %712 = vmatprep.subr.mxu0 0.0
  %713 = vmatpush1.msra.mxu0 0.0
  %714 = vmatprep.subr.mxu0 0.0
  %715 = vmatpush1.msra.mxu0 0.0
  %716 = vmatprep.subr.mxu0 0.0
  %717 = vmatpush1.msra.mxu0 0.0
  %718 = vmatprep.subr.mxu0 0.0
  %719 = vmatpush1.msra.mxu0 0.0
  %720 = vmatprep.subr.mxu0 0.0
  %721 = vmatpush1.msra.mxu0 %v678
  %722 = vmatprep.subr.mxu0 0.0
  %723 = vmatpush1.msra.mxu0 %v677
  %724 = vmatprep.subr.mxu0 0.0
  %725 = vmatpush1.msra.mxu0 %v676
  %726 = vmatprep.subr.mxu0 0.0
  %727 = vmatpush1.msra.mxu0 %v675
  %728 = vmatprep.subr.mxu0 0.0
  %729 = vmatpush2.msra.mxu0 0.0
  %730 = vmatprep.subr.mxu0 0.0
  %731 = vmatpush2.msra.mxu0 0.0
  %732 = vmatprep.subr.mxu0 0.0
  %733 = vmatpush2.msra.mxu0 0.0
  %734 = vmatprep.subr.mxu0 0.0
  %735 = vmatpush2.msra.mxu0 0.0
  %736 = vmatprep.subr.mxu0 0.0
  %737 = vmatpush2.msra.mxu0 0.0
  %738 = vmatprep.subr.mxu0 0.0
  %739 = vmatpush2.msra.mxu0 0.0
  %740 = vmatprep.subr.mxu0 0.0
  %741 = vmatpush2.msra.mxu0 0.0
  %742 = vmatprep.subr.mxu0 0.0
  %743 = vmatpush2.msra.mxu0 0.0
  %744 = vmatprep.subr.mxu0 0.0
  %745 = vmatpush2.msra.mxu0 0.0
  %746 = vmatprep.subr.mxu0 0.0
  %747 = vmatpush2.msra.mxu0 0.0
  %748 = vmatprep.subr.mxu0 0.0
  %749 = vmatpush2.msra.mxu0 0.0
  %750 = vmatprep.subr.mxu0 0.0
  %751 = vmatpush2.msra.mxu0 0.0
  %752 = vmatprep.subr.mxu0 0.0
  %753 = vmatpush2.msra.mxu0 0.0
  %754 = vmatprep.subr.mxu0 0.0
  %755 = vmatpush2.msra.mxu0 0.0
  %756 = vmatprep.subr.mxu0 0.0
  %757 = vmatpush2.msra.mxu0 0.0
  %758 = vmatprep.subr.mxu0 0.0
  %759 = vmatpush2.msra.mxu0 0.0
  %760 = vmatprep.mubr.f32.mxu0 0.0
  %761 = vmatmul.mubr.f32.gmra.mxu0 %v691
  %v762 = vpop.f32.mrf.mxu0
  %v763 = vadd.f32 %v687, %v762
  %v764 = vpop.f32.mrf.mxu0
  %765 = vmatprep.mubr.f32.mxu0 0.0
  %766 = vmatmul.mubr.f32.gmra.mxu0 %v694
  %v767 = vpop.f32.mrf.mxu0
  %v768 = vadd.f32 %v687, %v767
  %v769 = vpop.f32.mrf.mxu0
  %770 = vdwg.mxu0
  %vm771 = vcmask 31744
  %772 = vst.msk [vmem:[%s6] sm:$0xff] %vm771, %v763
  %773 = vst.msk [vmem:[%s6 + $0x8] sm:$0xff] %vm771, %v768
  // Predicated region
  $region26: #{tpu_custom_call.1} parent=0 // pred_check
    _
  $region27: #{tpu_custom_call.1} parent=0 // pred_check_branch
    %775 = sbr.rel (0) target = $region29
  $region28: #{tpu_custom_call.1} parent=0 // pred_region
    _
  $region29: #{tpu_custom_call.1} parent=0 // pred_fallthru
    _
  // Predicated region
  $region30: #{tpu_custom_call.1} parent=0 // pred_check
    _
  $region31: #{tpu_custom_call.1} parent=0 // pred_check_branch
    %777 = sbr.rel (0) target = $region33
  $region32: #{tpu_custom_call.1} parent=0 // pred_region
    _
  $region33: #{tpu_custom_call.1} parent=0 // pred_fallthru
    _

</llo_original>
